<compile_context>
chip_gen: v5e
topology: v5e:2x2
jax: 0.10.0
libtpu: 0.0.40
codegen_flags: <defaults>
</compile_context>

<pallas_src>
import jax
import jax.numpy as jnp
from jax.experimental import pallas as pl
from jax.experimental.pallas import tpu as pltpu


# ---------------------------------------------------------------------------
# Kernel
# ---------------------------------------------------------------------------
def _siamese_backbone_kernel(p_ref, q_ref, wb_ref, bconv_ref, sw_ref, bfc_ref,
                             out_p_ref, out_q_ref):
    """conv3x3(SAME)+bias+ReLU -> global-avg-pool -> FC for one batch tile of BOTH
    Siamese branches (shared weights, single launch).

    p_ref/q_ref: (H+2, BT, (W+2)*C)   bf16 zero-padded activations, batch on sublanes
    wb_ref:      (3, (W+2)*C, W*COUT) bf16 banded (Toeplitz) conv weights, one per H-tap
    bconv_ref:   (1, W*COUT)          f32 conv bias tiled over the W output positions
    sw_ref:      (W*COUT, EMB_PAD)    bf16 (pool-over-W selector @ W_fc) / (H*W)
    bfc_ref:     (1, EMB_PAD)         f32 FC bias, zero-padded to 128 lanes
    out_*_ref:   (BT, EMB_PAD)        f32
    """
    hp, bt, wc = p_ref.shape
    h = hp - 2
    lanes = wb_ref.shape[2]

    wb = wb_ref[...]
    bconv = bconv_ref[...]
    sw = sw_ref[...]
    bfc = bfc_ref[...]

    def embed(x_ref, o_ref):
        x = x_ref[...]                                         # (H+2, BT, WC) bf16
        # Conv as 3 accumulating lane-dense matmuls.  Each H-tap is a slice along
        # the leading, untiled axis (free), rows ordered (h_out, batch).
        taps = [
            jnp.dot(x[di:di + h].reshape(h * bt, wc), wb[di],
                    preferred_element_type=jnp.float32)
            for di in range(3)
        ]
        act = jnp.maximum(taps[0] + taps[1] + taps[2] + bconv, 0.0)  # (H*BT, W*COUT)
        # Pool over H: leading-axis sum (VPU), not an O(BT^2) indicator matmul.
        pooled = jnp.sum(act.reshape(h, bt, lanes), axis=0)          # (BT, W*COUT)
        # Pool over W + FC fused into one matmul (1/(H*W) folded into sw).
        emb = jnp.dot(pooled.astype(sw.dtype), sw,
                      preferred_element_type=jnp.float32)            # (BT, EMB_PAD)
        o_ref[...] = emb + bfc

    embed(p_ref, out_p_ref)
    embed(q_ref, out_q_ref)


# ---------------------------------------------------------------------------
# Weight preprocessing (hoisted out of the per-forward path)
# ---------------------------------------------------------------------------
def prepare_siamese_params(params, image_chw, compute_dtype=jnp.bfloat16):
    """Preprocess the shared backbone weights ONCE per weight update.

    Builds the banded (Toeplitz) conv weights with a single vectorized gather,
    the W-tiled conv bias, and the fused (pool-over-W @ W_fc)/(H*W) matrix
    zero-padded to 128 output lanes.
    """
    w_conv, b_conv, w_fc, b_fc = params
    c, h, w = image_chw
    k = 3
    cout = w_conv.shape[1]
    emb = w_fc.shape[1]
    wp = w + k - 1                                   # padded width (SAME conv)
    emb_pad = -(-emb // 128) * 128

    # wb[di, jp*C + ch, j*COUT + o] = w_conv[(di*K + (jp-j))*C + ch, o] if 0<=jp-j<K
    w4 = w_conv.reshape(k, k, c, cout)
    dj = jnp.arange(wp)[:, None] - jnp.arange(w)[None, :]            # (wp, w)
    valid = ((dj >= 0) & (dj < k)).astype(w_conv.dtype)
    band = w4[:, jnp.clip(dj, 0, k - 1)] * valid[None, :, :, None, None]
    wb = jnp.transpose(band, (0, 1, 3, 2, 4)).reshape(k, wp * c, w * cout)

    bconv = jnp.tile(b_conv.reshape(1, cout), (1, w)).astype(jnp.float32)   # (1, W*COUT)
    sw = jnp.tile(w_fc, (w, 1)) / float(h * w)                              # (W*COUT, EMB)
    sw_p = jnp.pad(sw, ((0, 0), (0, emb_pad - emb)))
    bfc_p = jnp.pad(b_fc.reshape(1, emb),
                    ((0, 0), (0, emb_pad - emb))).astype(jnp.float32)
    return (wb.astype(compute_dtype), bconv, sw_p.astype(compute_dtype), bfc_p)


# ---------------------------------------------------------------------------
# Forward
# ---------------------------------------------------------------------------
def _prep_activation(x_nchw, n_pad, compute_dtype=jnp.bfloat16):
    """NCHW -> (H+2, N_pad, (W+2)*C) bf16: SAME-conv zero halo, batch padded onto the
    sublane axis, (W, C) fused into lanes.  Single fused XLA transpose/pad/cast."""
    n, c, h, w = x_nchw.shape
    xt = jnp.transpose(x_nchw, (2, 0, 3, 1))                         # (H, N, W, C)
    xp = jnp.pad(xt, ((1, 1), (0, n_pad - n), (1, 1), (0, 0)))
    return xp.reshape(h + 2, n_pad, (w + 2) * c).astype(compute_dtype)


def siamese_trainer_forward(p_nchw, q_nchw, prepped, *, emb_dim, b_tile_cap=256):
    """SiameseTrainer.forward(p, q) -> (model(p), model(q)) with shared weights.

    Both branches go through ONE pallas_call (two input/output pairs, shared weight
    operands), so there is a single launch and no HBM concat copy.
    """
    assert p_nchw.shape == q_nchw.shape
    wb, bconv, sw_p, bfc_p = prepped
    n, c, h, w = p_nchw.shape
    wc = (w + 2) * c
    emb_pad = sw_p.shape[1]

    # Batch tile: as large as the batch allows, capped so the bf16 x tiles
    # (double-buffered, both branches) + f32 intermediates stay well inside the
    # 32 MiB scoped-VMEM limit set below (safe on v5e / v6e / v7x).
    n8 = -(-n // 8) * 8                              # sublane multiple
    b_tile = min(b_tile_cap, n8)
    n_pad = -(-n8 // b_tile) * b_tile

    p3 = _prep_activation(p_nchw, n_pad)
    q3 = _prep_activation(q_nchw, n_pad)

    grid = (n_pad // b_tile,)
    out_p, out_q = pl.pallas_call(
        _siamese_backbone_kernel,
        out_shape=(jax.ShapeDtypeStruct((n_pad, emb_pad), jnp.float32),
                   jax.ShapeDtypeStruct((n_pad, emb_pad), jnp.float32)),
        grid=grid,
        in_specs=[
            pl.BlockSpec((h + 2, b_tile, wc), lambda i: (0, i, 0)),   # p tile
            pl.BlockSpec((h + 2, b_tile, wc), lambda i: (0, i, 0)),   # q tile
            pl.BlockSpec(wb.shape, lambda i: (0, 0, 0)),              # shared conv weights
            pl.BlockSpec(bconv.shape, lambda i: (0, 0)),
            pl.BlockSpec(sw_p.shape, lambda i: (0, 0)),
            pl.BlockSpec(bfc_p.shape, lambda i: (0, 0)),
        ],
        out_specs=(pl.BlockSpec((b_tile, emb_pad), lambda i: (i, 0)),
                   pl.BlockSpec((b_tile, emb_pad), lambda i: (i, 0))),
        compiler_params=pltpu.CompilerParams(
            dimension_semantics=("parallel",),
            vmem_limit_bytes=32 * 1024 * 1024),
    )(p3, q3, wb, bconv, sw_p, bfc_p)
    return out_p[:n, :emb_dim], out_q[:n, :emb_dim]


# ---------------------------------------------------------------------------
# Pure-JAX f32 reference of the same backbone (im2col formulation) for checking.
# ---------------------------------------------------------------------------
def _im2col_nhwc(x_nhwc, k=3):
    n, h, w, c = x_nhwc.shape
    pad = k // 2
    xp = jnp.pad(x_nhwc, ((0, 0), (pad, pad), (pad, pad), (0, 0)))
    cols = [xp[:, i:i + h, j:j + w, :] for i in range(k) for j in range(k)]
    patches = jnp.stack(cols, axis=3)              # (N, H, W, k*k, C)
    return patches.reshape(n, h * w, k * k * c)


def _reference_embed(x_nhwc, w_conv, b_conv, w_fc, b_fc):
    patches = _im2col_nhwc(x_nhwc, k=3)                        # (N, HW, CKK)
    conv = jnp.einsum("npk,ko->npo", patches, w_conv) + b_conv[0]
    act = jnp.maximum(conv, 0.0)
    pooled = jnp.mean(act, axis=1)                             # (N, Cout)
    return pooled @ w_fc + b_fc[0]


if __name__ == "__main__":
    # Small shapes consistent with a conv forward: batch=2, channels=4, spatial=16.
    N, C, H, W = 2, 4, 16, 16
    COUT, EMB, K = 8, 32, 3

    key = jax.random.PRNGKey(0)
    k_p, k_q, k_wc, k_bc, k_wf, k_bf = jax.random.split(key, 6)

    p = jax.random.normal(k_p, (N, C, H, W), dtype=jnp.float32)
    q = jax.random.normal(k_q, (N, C, H, W), dtype=jnp.float32)

    # Deterministic synthetic parameters (shared between both branches).
    w_conv = 0.1 * jax.random.normal(k_wc, (K * K * C, COUT), dtype=jnp.float32)
    b_conv = 0.1 * jax.random.normal(k_bc, (1, COUT), dtype=jnp.float32)
    w_fc = 0.1 * jax.random.normal(k_wf, (COUT, EMB), dtype=jnp.float32)
    b_fc = 0.1 * jax.random.normal(k_bf, (1, EMB), dtype=jnp.float32)
    params = (w_conv, b_conv, w_fc, b_fc)

    # Weight preprocessing hoisted out of the per-forward path (recompute only on
    # a weight update, not every forward call).
    prepped = prepare_siamese_params(params, (C, H, W))

    fwd = jax.jit(siamese_trainer_forward, static_argnames=("emb_dim", "b_tile_cap"))
    out_p, out_q = fwd(p, q, prepped, emb_dim=EMB)
    jax.block_until_ready((out_p, out_q))

    # Sanity check against the pure-JAX f32 reference (bf16 MXU operands ->
    # relaxed tolerance; accumulation is f32).
    ref_p = _reference_embed(jnp.transpose(p, (0, 2, 3, 1)), *params)
    ref_q = _reference_embed(jnp.transpose(q, (0, 2, 3, 1)), *params)
    assert out_p.shape == (N, EMB) and out_q.shape == (N, EMB)
    assert jnp.allclose(out_p, ref_p, atol=1e-2, rtol=1e-2)
    assert jnp.allclose(out_q, ref_q, atol=1e-2, rtol=1e-2)

    print("KERNEL_OK")
</pallas_src>

<mosaic_0001>
module attributes {stable_mosaic.version = 11 : i64} {
  func.func @_siamese_backbone_kernel(%arg0: i32, %arg1: memref<18x8x72xbf16, #tpu.memory_space<vmem>>, %arg2: memref<18x8x72xbf16, #tpu.memory_space<vmem>>, %arg3: memref<3x72x128xbf16, #tpu.memory_space<vmem>>, %arg4: memref<1x128xf32, #tpu.memory_space<vmem>>, %arg5: memref<128x128xbf16, #tpu.memory_space<vmem>>, %arg6: memref<1x128xf32, #tpu.memory_space<vmem>>, %arg7: memref<8x128xf32, #tpu.memory_space<vmem>>, %arg8: memref<8x128xf32, #tpu.memory_space<vmem>>) attributes {dimension_semantics = [#tpu.dimension_semantics<parallel>], iteration_bounds = array<i64: 1>, scalar_prefetch = 0 : i64, scratch_operands = 0 : i64, tpu.core_type = #tpu.core_type<tc>, window_params = [{transform_indices = @transform_0, window_bounds = array<i64: 18, 8, 72>}, {transform_indices = @transform_1, window_bounds = array<i64: 18, 8, 72>}, {pipeline_mode = #tpu.pipeline_mode<synchronous>, transform_indices = @transform_2, window_bounds = array<i64: 3, 72, 128>}, {pipeline_mode = #tpu.pipeline_mode<synchronous>, transform_indices = @transform_3, window_bounds = array<i64: 1, 128>}, {pipeline_mode = #tpu.pipeline_mode<synchronous>, transform_indices = @transform_4, window_bounds = array<i64: 128, 128>}, {pipeline_mode = #tpu.pipeline_mode<synchronous>, transform_indices = @transform_5, window_bounds = array<i64: 1, 128>}, {transform_indices = @transform_6, window_bounds = array<i64: 8, 128>}, {transform_indices = @transform_7, window_bounds = array<i64: 8, 128>}]} {
    %c0 = arith.constant 0 : index
    %c0_0 = arith.constant 0 : index
    %c0_1 = arith.constant 0 : index
    %0 = vector.load %arg3[%c0, %c0_0, %c0_1] : memref<3x72x128xbf16, #tpu.memory_space<vmem>>, vector<3x72x128xbf16>
    %c0_2 = arith.constant 0 : index
    %c0_3 = arith.constant 0 : index
    %1 = vector.load %arg4[%c0_2, %c0_3] : memref<1x128xf32, #tpu.memory_space<vmem>>, vector<1x128xf32>
    %c0_4 = arith.constant 0 : index
    %c0_5 = arith.constant 0 : index
    %2 = vector.load %arg5[%c0_4, %c0_5] : memref<128x128xbf16, #tpu.memory_space<vmem>>, vector<128x128xbf16>
    %c0_6 = arith.constant 0 : index
    %c0_7 = arith.constant 0 : index
    %3 = vector.load %arg6[%c0_6, %c0_7] : memref<1x128xf32, #tpu.memory_space<vmem>>, vector<1x128xf32>
    %c0_8 = arith.constant 0 : index
    %c0_9 = arith.constant 0 : index
    %c0_10 = arith.constant 0 : index
    %4 = vector.load %arg1[%c0_8, %c0_9, %c0_10] : memref<18x8x72xbf16, #tpu.memory_space<vmem>>, vector<18x8x72xbf16>
    %5 = vector.extract_strided_slice %4 {offsets = [0, 0, 0], sizes = [16, 8, 72], strides = [1, 1, 1]} : vector<18x8x72xbf16> to vector<16x8x72xbf16>
    %6 = vector.shape_cast %5 : vector<16x8x72xbf16> to vector<128x72xbf16>
    %7 = vector.extract_strided_slice %0 {offsets = [0, 0, 0], sizes = [1, 72, 128], strides = [1, 1, 1]} : vector<3x72x128xbf16> to vector<1x72x128xbf16>
    %8 = vector.shape_cast %7 : vector<1x72x128xbf16> to vector<72x128xbf16>
    %cst = arith.constant dense<0.000000e+00> : vector<128x128xf32>
    %9 = tpu.matmul %6, %8, %cst {dimension_numbers = #tpu.dot_dimension_numbers<[1], [0], [0], [1], [0, 0, 1, 1], [], []>} : vector<128x72xbf16>, vector<72x128xbf16>, vector<128x128xf32> -> vector<128x128xf32>
    %10 = vector.extract_strided_slice %4 {offsets = [1, 0, 0], sizes = [16, 8, 72], strides = [1, 1, 1]} : vector<18x8x72xbf16> to vector<16x8x72xbf16>
    %11 = vector.shape_cast %10 : vector<16x8x72xbf16> to vector<128x72xbf16>
    %12 = vector.extract_strided_slice %0 {offsets = [1, 0, 0], sizes = [1, 72, 128], strides = [1, 1, 1]} : vector<3x72x128xbf16> to vector<1x72x128xbf16>
    %13 = vector.shape_cast %12 : vector<1x72x128xbf16> to vector<72x128xbf16>
    %cst_11 = arith.constant dense<0.000000e+00> : vector<128x128xf32>
    %14 = tpu.matmul %11, %13, %cst_11 {dimension_numbers = #tpu.dot_dimension_numbers<[1], [0], [0], [1], [0, 0, 1, 1], [], []>} : vector<128x72xbf16>, vector<72x128xbf16>, vector<128x128xf32> -> vector<128x128xf32>
    %15 = vector.extract_strided_slice %4 {offsets = [2, 0, 0], sizes = [16, 8, 72], strides = [1, 1, 1]} : vector<18x8x72xbf16> to vector<16x8x72xbf16>
    %16 = vector.shape_cast %15 : vector<16x8x72xbf16> to vector<128x72xbf16>
    %17 = vector.extract_strided_slice %0 {offsets = [2, 0, 0], sizes = [1, 72, 128], strides = [1, 1, 1]} : vector<3x72x128xbf16> to vector<1x72x128xbf16>
    %18 = vector.shape_cast %17 : vector<1x72x128xbf16> to vector<72x128xbf16>
    %cst_12 = arith.constant dense<0.000000e+00> : vector<128x128xf32>
    %19 = tpu.matmul %16, %18, %cst_12 {dimension_numbers = #tpu.dot_dimension_numbers<[1], [0], [0], [1], [0, 0, 1, 1], [], []>} : vector<128x72xbf16>, vector<72x128xbf16>, vector<128x128xf32> -> vector<128x128xf32>
    %20 = arith.addf %9, %14 : vector<128x128xf32>
    %21 = arith.addf %20, %19 : vector<128x128xf32>
    %22 = vector.broadcast %1 : vector<1x128xf32> to vector<128x128xf32>
    %23 = arith.addf %21, %22 : vector<128x128xf32>
    %cst_13 = arith.constant 0.000000e+00 : f32
    %24 = vector.broadcast %cst_13 : f32 to vector<128x128xf32>
    %25 = arith.maximumf %23, %24 : vector<128x128xf32>
    %26 = vector.shape_cast %25 : vector<128x128xf32> to vector<16x8x128xf32>
    %cst_14 = arith.constant dense<0.000000e+00> : vector<8x128xf32>
    %27 = vector.multi_reduction <add>, %26, %cst_14 [0] : vector<16x8x128xf32> to vector<8x128xf32>
    %28 = arith.truncf %27 : vector<8x128xf32> to vector<8x128xbf16>
    %cst_15 = arith.constant dense<0.000000e+00> : vector<8x128xf32>
    %29 = tpu.matmul %28, %2, %cst_15 {dimension_numbers = #tpu.dot_dimension_numbers<[1], [0], [0], [1], [0, 0, 1, 1], [], []>} : vector<8x128xbf16>, vector<128x128xbf16>, vector<8x128xf32> -> vector<8x128xf32>
    %30 = vector.broadcast %3 : vector<1x128xf32> to vector<8x128xf32>
    %31 = arith.addf %29, %30 : vector<8x128xf32>
    %c0_16 = arith.constant 0 : index
    %c0_17 = arith.constant 0 : index
    %32 = vector.load %arg7[%c0_16, %c0_17] : memref<8x128xf32, #tpu.memory_space<vmem>>, vector<8x128xf32>
    tpu.vector_store %arg7[%c0_16, %c0_17], %31 {strides = array<i32>} : memref<8x128xf32, #tpu.memory_space<vmem>>, vector<8x128xf32>,
    %c0_18 = arith.constant 0 : index
    %c0_19 = arith.constant 0 : index
    %c0_20 = arith.constant 0 : index
    %33 = vector.load %arg2[%c0_18, %c0_19, %c0_20] : memref<18x8x72xbf16, #tpu.memory_space<vmem>>, vector<18x8x72xbf16>
    %34 = vector.extract_strided_slice %33 {offsets = [0, 0, 0], sizes = [16, 8, 72], strides = [1, 1, 1]} : vector<18x8x72xbf16> to vector<16x8x72xbf16>
    %35 = vector.shape_cast %34 : vector<16x8x72xbf16> to vector<128x72xbf16>
    %36 = vector.extract_strided_slice %0 {offsets = [0, 0, 0], sizes = [1, 72, 128], strides = [1, 1, 1]} : vector<3x72x128xbf16> to vector<1x72x128xbf16>
    %37 = vector.shape_cast %36 : vector<1x72x128xbf16> to vector<72x128xbf16>
    %cst_21 = arith.constant dense<0.000000e+00> : vector<128x128xf32>
    %38 = tpu.matmul %35, %37, %cst_21 {dimension_numbers = #tpu.dot_dimension_numbers<[1], [0], [0], [1], [0, 0, 1, 1], [], []>} : vector<128x72xbf16>, vector<72x128xbf16>, vector<128x128xf32> -> vector<128x128xf32>
    %39 = vector.extract_strided_slice %33 {offsets = [1, 0, 0], sizes = [16, 8, 72], strides = [1, 1, 1]} : vector<18x8x72xbf16> to vector<16x8x72xbf16>
    %40 = vector.shape_cast %39 : vector<16x8x72xbf16> to vector<128x72xbf16>
    %41 = vector.extract_strided_slice %0 {offsets = [1, 0, 0], sizes = [1, 72, 128], strides = [1, 1, 1]} : vector<3x72x128xbf16> to vector<1x72x128xbf16>
    %42 = vector.shape_cast %41 : vector<1x72x128xbf16> to vector<72x128xbf16>
    %cst_22 = arith.constant dense<0.000000e+00> : vector<128x128xf32>
    %43 = tpu.matmul %40, %42, %cst_22 {dimension_numbers = #tpu.dot_dimension_numbers<[1], [0], [0], [1], [0, 0, 1, 1], [], []>} : vector<128x72xbf16>, vector<72x128xbf16>, vector<128x128xf32> -> vector<128x128xf32>
    %44 = vector.extract_strided_slice %33 {offsets = [2, 0, 0], sizes = [16, 8, 72], strides = [1, 1, 1]} : vector<18x8x72xbf16> to vector<16x8x72xbf16>
    %45 = vector.shape_cast %44 : vector<16x8x72xbf16> to vector<128x72xbf16>
    %46 = vector.extract_strided_slice %0 {offsets = [2, 0, 0], sizes = [1, 72, 128], strides = [1, 1, 1]} : vector<3x72x128xbf16> to vector<1x72x128xbf16>
    %47 = vector.shape_cast %46 : vector<1x72x128xbf16> to vector<72x128xbf16>
    %cst_23 = arith.constant dense<0.000000e+00> : vector<128x128xf32>
    %48 = tpu.matmul %45, %47, %cst_23 {dimension_numbers = #tpu.dot_dimension_numbers<[1], [0], [0], [1], [0, 0, 1, 1], [], []>} : vector<128x72xbf16>, vector<72x128xbf16>, vector<128x128xf32> -> vector<128x128xf32>
    %49 = arith.addf %38, %43 : vector<128x128xf32>
    %50 = arith.addf %49, %48 : vector<128x128xf32>
    %51 = vector.broadcast %1 : vector<1x128xf32> to vector<128x128xf32>
    %52 = arith.addf %50, %51 : vector<128x128xf32>
    %cst_24 = arith.constant 0.000000e+00 : f32
    %53 = vector.broadcast %cst_24 : f32 to vector<128x128xf32>
    %54 = arith.maximumf %52, %53 : vector<128x128xf32>
    %55 = vector.shape_cast %54 : vector<128x128xf32> to vector<16x8x128xf32>
    %cst_25 = arith.constant dense<0.000000e+00> : vector<8x128xf32>
    %56 = vector.multi_reduction <add>, %55, %cst_25 [0] : vector<16x8x128xf32> to vector<8x128xf32>
    %57 = arith.truncf %56 : vector<8x128xf32> to vector<8x128xbf16>
    %cst_26 = arith.constant dense<0.000000e+00> : vector<8x128xf32>
    %58 = tpu.matmul %57, %2, %cst_26 {dimension_numbers = #tpu.dot_dimension_numbers<[1], [0], [0], [1], [0, 0, 1, 1], [], []>} : vector<8x128xbf16>, vector<128x128xbf16>, vector<8x128xf32> -> vector<8x128xf32>
    %59 = vector.broadcast %3 : vector<1x128xf32> to vector<8x128xf32>
    %60 = arith.addf %58, %59 : vector<8x128xf32>
    %c0_27 = arith.constant 0 : index
    %c0_28 = arith.constant 0 : index
    %61 = vector.load %arg8[%c0_27, %c0_28] : memref<8x128xf32, #tpu.memory_space<vmem>>, vector<8x128xf32>
    tpu.vector_store %arg8[%c0_27, %c0_28], %60 {strides = array<i32>} : memref<8x128xf32, #tpu.memory_space<vmem>>, vector<8x128xf32>,
    return
  }
  func.func @transform_0(%arg0: i32) -> (i32, i32, i32) {
    %c0_i32 = arith.constant 0 : i32
    %c0_i32_0 = arith.constant 0 : i32
    %c0_i32_1 = arith.constant 0 : i32
    return %c0_i32, %arg0, %c0_i32_0 : i32, i32, i32
  }
  func.func @transform_1(%arg0: i32) -> (i32, i32, i32) {
    %c0_i32 = arith.constant 0 : i32
    %c0_i32_0 = arith.constant 0 : i32
    %c0_i32_1 = arith.constant 0 : i32
    return %c0_i32, %arg0, %c0_i32_0 : i32, i32, i32
  }
  func.func @transform_2(%arg0: i32) -> (i32, i32, i32) {
    %c0_i32 = arith.constant 0 : i32
    %c0_i32_0 = arith.constant 0 : i32
    %c0_i32_1 = arith.constant 0 : i32
    %c0_i32_2 = arith.constant 0 : i32
    return %c0_i32, %c0_i32_0, %c0_i32_1 : i32, i32, i32
  }
  func.func @transform_3(%arg0: i32) -> (i32, i32) {
    %c0_i32 = arith.constant 0 : i32
    %c0_i32_0 = arith.constant 0 : i32
    %c0_i32_1 = arith.constant 0 : i32
    return %c0_i32, %c0_i32_0 : i32, i32
  }
  func.func @transform_4(%arg0: i32) -> (i32, i32) {
    %c0_i32 = arith.constant 0 : i32
    %c0_i32_0 = arith.constant 0 : i32
    %c0_i32_1 = arith.constant 0 : i32
    return %c0_i32, %c0_i32_0 : i32, i32
  }
  func.func @transform_5(%arg0: i32) -> (i32, i32) {
    %c0_i32 = arith.constant 0 : i32
    %c0_i32_0 = arith.constant 0 : i32
    %c0_i32_1 = arith.constant 0 : i32
    return %c0_i32, %c0_i32_0 : i32, i32
  }
  func.func @transform_6(%arg0: i32) -> (i32, i32) {
    %c0_i32 = arith.constant 0 : i32
    %c0_i32_0 = arith.constant 0 : i32
    return %arg0, %c0_i32 : i32, i32
  }
  func.func @transform_7(%arg0: i32) -> (i32, i32) {
    %c0_i32 = arith.constant 0 : i32
    %c0_i32_0 = arith.constant 0 : i32
    return %arg0, %c0_i32 : i32, i32
  }
}

</mosaic_0001>

<llo_original>
// kernel: siamese_trainer_forward.1
$region0: #{siamese_trainer_forward.1}
  #allocation0 [shape = 'u32[]', space=smem, size = 0x4, offset = 0x4, fixed_abs, tag = 'smem constant byte address 0x4 - core index']
  #allocation1 [shape = 'u32[72,128]{1,0:T(1,128)}', space=vmem, size = 0x9000, scoped, tag = 'internal scratch']
  %s0 = inlined_call_operand.vmem [shape: bf16[18,8,72], index: 0, kind: input, shape index: {}]
  %s1 = inlined_call_operand.vmem [shape: bf16[18,8,72], index: 1, kind: input, shape index: {}]
  %s2 = inlined_call_operand.vmem [shape: bf16[3,72,128], index: 2, kind: input, shape index: {}]
  %s3 = inlined_call_operand.vmem [shape: f32[1,128], index: 3, kind: input, shape index: {}]
  %s4 = inlined_call_operand.vmem [shape: bf16[128,128], index: 4, kind: input, shape index: {}]
  %s5 = inlined_call_operand.vmem [shape: f32[1,128], index: 5, kind: input, shape index: {}]
  %s6 = inlined_call_operand.vmem [shape: f32[8,128], index: 6, kind: output, shape index: {0}]
  %s7 = inlined_call_operand.vmem [shape: f32[8,128], index: 7, kind: output, shape index: {1}]
  %8 = xla_tuple %s6, %s7
  %s9 = sld [smem:[#allocation0]]
  $region42: #{siamese_trainer_forward.1} parent=0
    _
  %s11 = ssub.s32 1, %s9
  %s12 = scalar_select 0, %s11, %s9
  // Predicated region
  $region2: #{siamese_trainer_forward.1} parent=0 // pred_check
    _
  $region3: #{siamese_trainer_forward.1} parent=0 // pred_check_branch
    %14 = sbr.rel (0) target = $region5
  $region4: #{siamese_trainer_forward.1} parent=0 // pred_region
    _
  $region5: #{siamese_trainer_forward.1} parent=0 // pred_fallthru
    _
  // Predicated region
  $region6: #{siamese_trainer_forward.1} parent=0 // pred_check
    _
  $region7: #{siamese_trainer_forward.1} parent=0 // pred_check_branch
    %16 = sbr.rel (0) target = $region9
  $region8: #{siamese_trainer_forward.1} parent=0 // pred_region
    _
  $region9: #{siamese_trainer_forward.1} parent=0 // pred_fallthru
    _
  // Predicated region
  $region10: #{siamese_trainer_forward.1} parent=0 // pred_check
    _
  $region11: #{siamese_trainer_forward.1} parent=0 // pred_check_branch
    %18 = sbr.rel (0) target = $region13
  $region12: #{siamese_trainer_forward.1} parent=0 // pred_region
    _
  $region13: #{siamese_trainer_forward.1} parent=0 // pred_fallthru
    _
  // Predicated region
  $region14: #{siamese_trainer_forward.1} parent=0 // pred_check
    _
  $region15: #{siamese_trainer_forward.1} parent=0 // pred_check_branch
    %20 = sbr.rel (0) target = $region17
  $region16: #{siamese_trainer_forward.1} parent=0 // pred_region
    _
  $region17: #{siamese_trainer_forward.1} parent=0 // pred_fallthru
    _
  // Predicated region
  $region18: #{siamese_trainer_forward.1} parent=0 // pred_check
    _
  $region19: #{siamese_trainer_forward.1} parent=0 // pred_check_branch
    %22 = sbr.rel (0) target = $region21
  $region20: #{siamese_trainer_forward.1} parent=0 // pred_region
    _
  $region21: #{siamese_trainer_forward.1} parent=0 // pred_fallthru
    _
  // Predicated region
  $region22: #{siamese_trainer_forward.1} parent=0 // pred_check
    _
  $region23: #{siamese_trainer_forward.1} parent=0 // pred_check_branch
    %24 = sbr.rel (0) target = $region25
  $region24: #{siamese_trainer_forward.1} parent=0 // pred_region
    _
  $region25: #{siamese_trainer_forward.1} parent=0 // pred_fallthru
    _
  %v26 = vld [vmem:[%s2] sm:$0xf]
  %v27 = vld [vmem:[%s2 + $0x4] sm:$0xf]
  %v28 = vld [vmem:[%s2 + $0x8] sm:$0xf]
  %v29 = vld [vmem:[%s2 + $0xc] sm:$0xf]
  %v30 = vld [vmem:[%s2 + $0x10] sm:$0xf]
  %v31 = vld [vmem:[%s2 + $0x14] sm:$0xf]
  %v32 = vld [vmem:[%s2 + $0x18] sm:$0xf]
  %v33 = vld [vmem:[%s2 + $0x1c] sm:$0xf]
  %v34 = vld [vmem:[%s2 + $0x20] sm:$0xf]
  %v35 = vld [vmem:[%s2 + $0x24] sm:$0xf]
  %v36 = vld [vmem:[%s2 + $0x28] sm:$0xf]
  %v37 = vld [vmem:[%s2 + $0x2c] sm:$0xf]
  %v38 = vld [vmem:[%s2 + $0x30] sm:$0xf]
  %v39 = vld [vmem:[%s2 + $0x34] sm:$0xf]
  %v40 = vld [vmem:[%s2 + $0x38] sm:$0xf]
  %v41 = vld [vmem:[%s2 + $0x3c] sm:$0xf]
  %v42 = vld [vmem:[%s2 + $0x40] sm:$0xf]
  %v43 = vld [vmem:[%s2 + $0x44] sm:$0xf]
  %v44 = vld [vmem:[%s2 + $0x48] sm:$0xf]
  %v45 = vld [vmem:[%s2 + $0x4c] sm:$0xf]
  %v46 = vld [vmem:[%s2 + $0x50] sm:$0xf]
  %v47 = vld [vmem:[%s2 + $0x54] sm:$0xf]
  %v48 = vld [vmem:[%s2 + $0x58] sm:$0xf]
  %v49 = vld [vmem:[%s2 + $0x5c] sm:$0xf]
  %v50 = vld [vmem:[%s2 + $0x60] sm:$0xf]
  %v51 = vld [vmem:[%s2 + $0x64] sm:$0xf]
  %v52 = vld [vmem:[%s2 + $0x68] sm:$0xf]
  %v53 = vld [vmem:[%s3] sm:$0x1]
  %v54 = vld [vmem:[%s4] sm:$0xf]
  %v55 = vld [vmem:[%s4 + $0x4] sm:$0xf]
  %v56 = vld [vmem:[%s4 + $0x8] sm:$0xf]
  %v57 = vld [vmem:[%s4 + $0xc] sm:$0xf]
  %v58 = vld [vmem:[%s4 + $0x10] sm:$0xf]
  %v59 = vld [vmem:[%s4 + $0x14] sm:$0xf]
  %v60 = vld [vmem:[%s4 + $0x18] sm:$0xf]
  %v61 = vld [vmem:[%s4 + $0x1c] sm:$0xf]
  %v62 = vld [vmem:[%s4 + $0x20] sm:$0xf]
  %v63 = vld [vmem:[%s4 + $0x24] sm:$0xf]
  %v64 = vld [vmem:[%s4 + $0x28] sm:$0xf]
  %v65 = vld [vmem:[%s4 + $0x2c] sm:$0xf]
  %v66 = vld [vmem:[%s4 + $0x30] sm:$0xf]
  %v67 = vld [vmem:[%s4 + $0x34] sm:$0xf]
  %v68 = vld [vmem:[%s4 + $0x38] sm:$0xf]
  %v69 = vld [vmem:[%s4 + $0x3c] sm:$0xf]
  %v70 = vld [vmem:[%s5] sm:$0x1]
  %v71 = vld [vmem:[%s0] sm:$0xf]
  %v72 = vld [vmem:[%s0 + $0x4] sm:$0xf]
  %v73 = vld [vmem:[%s0 + $0x8] sm:$0xf]
  %v74 = vld [vmem:[%s0 + $0xc] sm:$0xf]
  %v75 = vld [vmem:[%s0 + $0x10] sm:$0xf]
  %v76 = vld [vmem:[%s0 + $0x14] sm:$0xf]
  %v77 = vld [vmem:[%s0 + $0x18] sm:$0xf]
  %v78 = vld [vmem:[%s0 + $0x1c] sm:$0xf]
  %v79 = vld [vmem:[%s0 + $0x20] sm:$0xf]
  %v80 = vld [vmem:[%s0 + $0x24] sm:$0xf]
  %v81 = vld [vmem:[%s0 + $0x28] sm:$0xf]
  %v82 = vld [vmem:[%s0 + $0x2c] sm:$0xf]
  %v83 = vld [vmem:[%s0 + $0x30] sm:$0xf]
  %v84 = vld [vmem:[%s0 + $0x34] sm:$0xf]
  %v85 = vld [vmem:[%s0 + $0x38] sm:$0xf]
  %v86 = vld [vmem:[%s0 + $0x3c] sm:$0xf]
  %v87 = vld [vmem:[%s0 + $0x40] sm:$0xf]
  %v88 = vld [vmem:[%s0 + $0x44] sm:$0xf]
  %v105 = vunpack.c.l.b16 %v72
  %v106 = vunpack.c.l.b16 %v73
  %v107 = vunpack.c.l.b16 %v74
  %v108 = vunpack.c.l.b16 %v75
  %v109 = vunpack.c.l.b16 %v76
  %v110 = vunpack.c.l.b16 %v77
  %v111 = vunpack.c.l.b16 %v78
  %v112 = vunpack.c.l.b16 %v79
  %v113 = vunpack.c.l.b16 %v80
  %v114 = vunpack.c.l.b16 %v81
  %v115 = vunpack.c.l.b16 %v82
  %v116 = vunpack.c.l.b16 %v83
  %v117 = vunpack.c.l.b16 %v84
  %v118 = vunpack.c.l.b16 %v85
  %v119 = vunpack.c.l.b16 %v86
  %v120 = vunpack.c.l.b16 %v87
  %v121 = vpack.c.b16 %v106, %v105
  %v122 = vpack.c.b16 %v108, %v107
  %v123 = vpack.c.b16 %v110, %v109
  %v124 = vpack.c.b16 %v112, %v111
  %v125 = vpack.c.b16 %v114, %v113
  %v126 = vpack.c.b16 %v116, %v115
  %v127 = vpack.c.b16 %v118, %v117
  %v128 = vpack.c.b16 %v120, %v119
  %v138 = vunpack.c.l.b16 %v35
  %v139 = vunpack.c.l.b16 %v36
  %v140 = vunpack.c.l.b16 %v37
  %v141 = vunpack.c.l.b16 %v38
  %v142 = vunpack.c.l.b16 %v39
  %v143 = vunpack.c.l.b16 %v40
  %v144 = vunpack.c.l.b16 %v41
  %v145 = vunpack.c.l.b16 %v42
  %v146 = vunpack.c.l.b16 %v43
  %v147 = vpack.c.b16 %v139, %v138
  %v148 = vpack.c.b16 %v141, %v140
  %v149 = vpack.c.b16 %v143, %v142
  %v150 = vpack.c.b16 %v145, %v144
  %v151 = vpack.c.b16 %v146, %v146
  %vm156 = vcmask 588800
  %v158 = vsel %vm156, %v121, 0
  %v161 = vsel %vm156, %v122, 0
  %v164 = vsel %vm156, %v123, 0
  %v167 = vsel %vm156, %v124, 0
  %v170 = vsel %vm156, %v125, 0
  %v173 = vsel %vm156, %v126, 0
  %v176 = vsel %vm156, %v127, 0
  %v179 = vsel %vm156, %v128, 0
  %vm181 = vcmask 1043456
  %v183 = vsel %vm181, %v151, 0
  %185 = vmatpush.bf16.msra.mxu0 0
  %186 = vmatpush.bf16.msra.mxu0 0
  %187 = vmatpush.bf16.msra.mxu0 0
  %188 = vmatpush.bf16.msra.mxu0 %v183
  %189 = vmatpush.bf16.msra.mxu0 %v150
  %190 = vmatpush.bf16.msra.mxu0 %v149
  %191 = vmatpush.bf16.msra.mxu0 %v148
  %192 = vmatpush.bf16.msra.mxu0 %v147
  %193 = vmatmul.bf16.gmra.mxu0 %v158
  %v194 = vpop.f32.mrf.mxu0
  %v195 = vadd.f32 0.0, %v194
  %v196 = vpop.f32.mrf.mxu0
  %v197 = vadd.f32 0.0, %v196
  %198 = vmatmul.bf16.gmra.mxu0 %v161
  %v199 = vpop.f32.mrf.mxu0
  %v200 = vadd.f32 0.0, %v199
  %v201 = vpop.f32.mrf.mxu0
  %v202 = vadd.f32 0.0, %v201
  %203 = vmatmul.bf16.gmra.mxu0 %v164
  %v204 = vpop.f32.mrf.mxu0
  %v205 = vadd.f32 0.0, %v204
  %v206 = vpop.f32.mrf.mxu0
  %v207 = vadd.f32 0.0, %v206
  %208 = vmatmul.bf16.gmra.mxu0 %v167
  %v209 = vpop.f32.mrf.mxu0
  %v210 = vadd.f32 0.0, %v209
  %v211 = vpop.f32.mrf.mxu0
  %v212 = vadd.f32 0.0, %v211
  %213 = vmatmul.bf16.gmra.mxu0 %v170
  %v214 = vpop.f32.mrf.mxu0
  %v215 = vadd.f32 0.0, %v214
  %v216 = vpop.f32.mrf.mxu0
  %v217 = vadd.f32 0.0, %v216
  %218 = vmatmul.bf16.gmra.mxu0 %v173
  %v219 = vpop.f32.mrf.mxu0
  %v220 = vadd.f32 0.0, %v219
  %v221 = vpop.f32.mrf.mxu0
  %v222 = vadd.f32 0.0, %v221
  %223 = vmatmul.bf16.gmra.mxu0 %v176
  %v224 = vpop.f32.mrf.mxu0
  %v225 = vadd.f32 0.0, %v224
  %v226 = vpop.f32.mrf.mxu0
  %v227 = vadd.f32 0.0, %v226
  %228 = vmatmul.bf16.gmra.mxu0 %v179
  %v229 = vpop.f32.mrf.mxu0
  %v230 = vadd.f32 0.0, %v229
  %v231 = vpop.f32.mrf.mxu0
  %v232 = vadd.f32 0.0, %v231
  %233 = vdwg.mxu0
  %v235 = vunpack.c.l.b16 %v88
  %v236 = vpack.c.b16 %v107, %v106
  %v237 = vpack.c.b16 %v109, %v108
  %v238 = vpack.c.b16 %v111, %v110
  %v239 = vpack.c.b16 %v113, %v112
  %v240 = vpack.c.b16 %v115, %v114
  %v241 = vpack.c.b16 %v117, %v116
  %v242 = vpack.c.b16 %v119, %v118
  %v243 = vpack.c.b16 %v235, %v120
  %v253 = vunpack.c.l.b16 %v44
  %v254 = vunpack.c.l.b16 %v45
  %v255 = vunpack.c.l.b16 %v46
  %v256 = vunpack.c.l.b16 %v47
  %v257 = vunpack.c.l.b16 %v48
  %v258 = vunpack.c.l.b16 %v49
  %v259 = vunpack.c.l.b16 %v50
  %v260 = vunpack.c.l.b16 %v51
  %v261 = vunpack.c.l.b16 %v52
  %v262 = vpack.c.b16 %v254, %v253
  %v263 = vpack.c.b16 %v256, %v255
  %v264 = vpack.c.b16 %v258, %v257
  %v265 = vpack.c.b16 %v260, %v259
  %v266 = vpack.c.b16 %v261, %v261
  %v272 = vsel %vm156, %v236, 0
  %v275 = vsel %vm156, %v237, 0
  %v278 = vsel %vm156, %v238, 0
  %v281 = vsel %vm156, %v239, 0
  %v284 = vsel %vm156, %v240, 0
  %v287 = vsel %vm156, %v241, 0
  %v290 = vsel %vm156, %v242, 0
  %v293 = vsel %vm156, %v243, 0
  %v296 = vsel %vm181, %v266, 0
  %298 = vmatpush.bf16.msra.mxu0 0
  %299 = vmatpush.bf16.msra.mxu0 0
  %300 = vmatpush.bf16.msra.mxu0 0
  %301 = vmatpush.bf16.msra.mxu0 %v296
  %302 = vmatpush.bf16.msra.mxu0 %v265
  %303 = vmatpush.bf16.msra.mxu0 %v264
  %304 = vmatpush.bf16.msra.mxu0 %v263
  %305 = vmatpush.bf16.msra.mxu0 %v262
  %306 = vmatmul.bf16.gmra.mxu0 %v272
  %v307 = vpop.f32.mrf.mxu0
  %v308 = vadd.f32 0.0, %v307
  %v309 = vpop.f32.mrf.mxu0
  %v310 = vadd.f32 0.0, %v309
  %311 = vmatmul.bf16.gmra.mxu0 %v275
  %v312 = vpop.f32.mrf.mxu0
  %v313 = vadd.f32 0.0, %v312
  %v314 = vpop.f32.mrf.mxu0
  %v315 = vadd.f32 0.0, %v314
  %316 = vmatmul.bf16.gmra.mxu0 %v278
  %v317 = vpop.f32.mrf.mxu0
  %v318 = vadd.f32 0.0, %v317
  %v319 = vpop.f32.mrf.mxu0
  %v320 = vadd.f32 0.0, %v319
  %321 = vmatmul.bf16.gmra.mxu0 %v281
  %v322 = vpop.f32.mrf.mxu0
  %v323 = vadd.f32 0.0, %v322
  %v324 = vpop.f32.mrf.mxu0
  %v325 = vadd.f32 0.0, %v324
  %326 = vmatmul.bf16.gmra.mxu0 %v284
  %v327 = vpop.f32.mrf.mxu0
  %v328 = vadd.f32 0.0, %v327
  %v329 = vpop.f32.mrf.mxu0
  %v330 = vadd.f32 0.0, %v329
  %331 = vmatmul.bf16.gmra.mxu0 %v287
  %v332 = vpop.f32.mrf.mxu0
  %v333 = vadd.f32 0.0, %v332
  %v334 = vpop.f32.mrf.mxu0
  %v335 = vadd.f32 0.0, %v334
  %336 = vmatmul.bf16.gmra.mxu0 %v290
  %v337 = vpop.f32.mrf.mxu0
  %v338 = vadd.f32 0.0, %v337
  %v339 = vpop.f32.mrf.mxu0
  %v340 = vadd.f32 0.0, %v339
  %341 = vmatmul.bf16.gmra.mxu0 %v293
  %v342 = vpop.f32.mrf.mxu0
  %v343 = vadd.f32 0.0, %v342
  %v344 = vpop.f32.mrf.mxu0
  %v345 = vadd.f32 0.0, %v344
  %346 = vdwg.mxu0
  %v348 = vunpack.c.l.b16 %v71
  %v349 = vpack.c.b16 %v105, %v348
  %v359 = vunpack.c.l.b16 %v26
  %v360 = vunpack.c.l.b16 %v27
  %v361 = vunpack.c.l.b16 %v28
  %v362 = vunpack.c.l.b16 %v29
  %v363 = vunpack.c.l.b16 %v30
  %v364 = vunpack.c.l.b16 %v31
  %v365 = vunpack.c.l.b16 %v32
  %v366 = vunpack.c.l.b16 %v33
  %v367 = vunpack.c.l.b16 %v34
  %v368 = vpack.c.b16 %v360, %v359
  %v369 = vpack.c.b16 %v362, %v361
  %v370 = vpack.c.b16 %v364, %v363
  %v371 = vpack.c.b16 %v366, %v365
  %v372 = vpack.c.b16 %v367, %v367
  %v378 = vsel %vm156, %v349, 0
  %v381 = vsel %vm181, %v372, 0
  %383 = vmatpush.bf16.msra.mxu0 0
  %384 = vmatpush.bf16.msra.mxu0 0
  %385 = vmatpush.bf16.msra.mxu0 0
  %386 = vmatpush.bf16.msra.mxu0 %v381
  %387 = vmatpush.bf16.msra.mxu0 %v371
  %388 = vmatpush.bf16.msra.mxu0 %v370
  %389 = vmatpush.bf16.msra.mxu0 %v369
  %390 = vmatpush.bf16.msra.mxu0 %v368
  %391 = vmatmul.bf16.gmra.mxu0 %v378
  %v392 = vpop.f32.mrf.mxu0
  %v393 = vadd.f32 %v195, %v392
  %v394 = vpop.f32.mrf.mxu0
  %v395 = vadd.f32 %v197, %v394
  %396 = vmatmul.bf16.gmra.mxu0 %v272
  %v397 = vpop.f32.mrf.mxu0
  %v398 = vadd.f32 %v200, %v397
  %v399 = vpop.f32.mrf.mxu0
  %v400 = vadd.f32 %v202, %v399
  %401 = vmatmul.bf16.gmra.mxu0 %v275
  %v402 = vpop.f32.mrf.mxu0
  %v403 = vadd.f32 %v205, %v402
  %v404 = vpop.f32.mrf.mxu0
  %v405 = vadd.f32 %v207, %v404
  %406 = vmatmul.bf16.gmra.mxu0 %v278
  %v407 = vpop.f32.mrf.mxu0
  %v408 = vadd.f32 %v210, %v407
  %v409 = vpop.f32.mrf.mxu0
  %v410 = vadd.f32 %v212, %v409
  %411 = vmatmul.bf16.gmra.mxu0 %v281
  %v412 = vpop.f32.mrf.mxu0
  %v413 = vadd.f32 %v215, %v412
  %v414 = vpop.f32.mrf.mxu0
  %v415 = vadd.f32 %v217, %v414
  %416 = vmatmul.bf16.gmra.mxu0 %v284
  %v417 = vpop.f32.mrf.mxu0
  %v418 = vadd.f32 %v220, %v417
  %v419 = vpop.f32.mrf.mxu0
  %v420 = vadd.f32 %v222, %v419
  %421 = vmatmul.bf16.gmra.mxu0 %v287
  %v422 = vpop.f32.mrf.mxu0
  %v423 = vadd.f32 %v225, %v422
  %v424 = vpop.f32.mrf.mxu0
  %v425 = vadd.f32 %v227, %v424
  %426 = vmatmul.bf16.gmra.mxu0 %v290
  %v427 = vpop.f32.mrf.mxu0
  %v428 = vadd.f32 %v230, %v427
  %v429 = vpop.f32.mrf.mxu0
  %v430 = vadd.f32 %v232, %v429
  %431 = vdwg.mxu0
  %v432 = vadd.f32 %v393, %v308
  %v433 = vadd.f32 %v395, %v310
  %v434 = vadd.f32 %v398, %v313
  %v435 = vadd.f32 %v400, %v315
  %v436 = vadd.f32 %v403, %v318
  %v437 = vadd.f32 %v405, %v320
  %v438 = vadd.f32 %v408, %v323
  %v439 = vadd.f32 %v410, %v325
  %v440 = vadd.f32 %v413, %v328
  %v441 = vadd.f32 %v415, %v330
  %v442 = vadd.f32 %v418, %v333
  %v443 = vadd.f32 %v420, %v335
  %v444 = vadd.f32 %v423, %v338
  %v445 = vadd.f32 %v425, %v340
  %v446 = vadd.f32 %v428, %v343
  %v447 = vadd.f32 %v430, %v345
  %v449 = vperm.slane %v53, 0
  %v451 = vadd.f32 %v432, %v449
  %v452 = vadd.f32 %v433, %v449
  %v453 = vadd.f32 %v434, %v449
  %v454 = vadd.f32 %v435, %v449
  %v455 = vadd.f32 %v436, %v449
  %v456 = vadd.f32 %v437, %v449
  %v457 = vadd.f32 %v438, %v449
  %v458 = vadd.f32 %v439, %v449
  %v459 = vadd.f32 %v440, %v449
  %v460 = vadd.f32 %v441, %v449
  %v461 = vadd.f32 %v442, %v449
  %v462 = vadd.f32 %v443, %v449
  %v463 = vadd.f32 %v444, %v449
  %v464 = vadd.f32 %v445, %v449
  %v465 = vadd.f32 %v446, %v449
  %v466 = vadd.f32 %v447, %v449
  %v467 = vmax.f32 %v451, 0.0
  %v468 = vmax.f32 %v452, 0.0
  %v469 = vmax.f32 %v453, 0.0
  %v470 = vmax.f32 %v454, 0.0
  %v471 = vmax.f32 %v455, 0.0
  %v472 = vmax.f32 %v456, 0.0
  %v473 = vmax.f32 %v457, 0.0
  %v474 = vmax.f32 %v458, 0.0
  %v475 = vmax.f32 %v459, 0.0
  %v476 = vmax.f32 %v460, 0.0
  %v477 = vmax.f32 %v461, 0.0
  %v478 = vmax.f32 %v462, 0.0
  %v479 = vmax.f32 %v463, 0.0
  %v480 = vmax.f32 %v464, 0.0
  %v481 = vmax.f32 %v465, 0.0
  %v482 = vmax.f32 %v466, 0.0
  %v483 = vadd.f32 %v467, %v468
  %v484 = vadd.f32 %v483, %v469
  %v485 = vadd.f32 %v484, %v470
  %v486 = vadd.f32 %v485, %v471
  %v487 = vadd.f32 %v486, %v472
  %v488 = vadd.f32 %v487, %v473
  %v489 = vadd.f32 %v488, %v474
  %v490 = vadd.f32 %v489, %v475
  %v491 = vadd.f32 %v490, %v476
  %v492 = vadd.f32 %v491, %v477
  %v493 = vadd.f32 %v492, %v478
  %v494 = vadd.f32 %v493, %v479
  %v495 = vadd.f32 %v494, %v480
  %v496 = vadd.f32 %v495, %v481
  %v497 = vadd.f32 %v496, %v482
  %v498 = vpack.c.bf16 %v497, %v497
  %v500 = vperm.slane %v70, 0
  %v518 = vunpack.c.l.b16 %v54
  %v519 = vunpack.c.l.b16 %v55
  %v520 = vunpack.c.l.b16 %v56
  %v521 = vunpack.c.l.b16 %v57
  %v522 = vunpack.c.l.b16 %v58
  %v523 = vunpack.c.l.b16 %v59
  %v524 = vunpack.c.l.b16 %v60
  %v525 = vunpack.c.l.b16 %v61
  %v526 = vunpack.c.l.b16 %v62
  %v527 = vunpack.c.l.b16 %v63
  %v528 = vunpack.c.l.b16 %v64
  %v529 = vunpack.c.l.b16 %v65
  %v530 = vunpack.c.l.b16 %v66
  %v531 = vunpack.c.l.b16 %v67
  %v532 = vunpack.c.l.b16 %v68
  %v533 = vunpack.c.l.b16 %v69
  %v534 = vpack.c.b16 %v519, %v518
  %v535 = vpack.c.b16 %v521, %v520
  %v536 = vpack.c.b16 %v523, %v522
  %v537 = vpack.c.b16 %v525, %v524
  %v538 = vpack.c.b16 %v527, %v526
  %v539 = vpack.c.b16 %v529, %v528
  %v540 = vpack.c.b16 %v531, %v530
  %v541 = vpack.c.b16 %v533, %v532
  %550 = vmatpush.bf16.msra.mxu0 %v541
  %551 = vmatpush.bf16.msra.mxu0 %v540
  %552 = vmatpush.bf16.msra.mxu0 %v539
  %553 = vmatpush.bf16.msra.mxu0 %v538
  %554 = vmatpush.bf16.msra.mxu0 %v537
  %555 = vmatpush.bf16.msra.mxu0 %v536
  %556 = vmatpush.bf16.msra.mxu0 %v535
  %557 = vmatpush.bf16.msra.mxu0 %v534
  %558 = vmatmul.bf16.gmra.mxu0 %v498
  %v559 = vpop.f32.mrf.mxu0
  %v560 = vadd.f32 %v500, %v559
  %v561 = vpop.f32.mrf.mxu0
  %562 = vdwg.mxu0
  %563 = vst [vmem:[%s6] sm:$0xff] %v560
  %v564 = vld [vmem:[%s1] sm:$0xf]
  %v565 = vld [vmem:[%s1 + $0x4] sm:$0xf]
  %v566 = vld [vmem:[%s1 + $0x8] sm:$0xf]
  %v567 = vld [vmem:[%s1 + $0xc] sm:$0xf]
  %v568 = vld [vmem:[%s1 + $0x10] sm:$0xf]
  %v569 = vld [vmem:[%s1 + $0x14] sm:$0xf]
  %v570 = vld [vmem:[%s1 + $0x18] sm:$0xf]
  %v571 = vld [vmem:[%s1 + $0x1c] sm:$0xf]
  %v572 = vld [vmem:[%s1 + $0x20] sm:$0xf]
  %v573 = vld [vmem:[%s1 + $0x24] sm:$0xf]
  %v574 = vld [vmem:[%s1 + $0x28] sm:$0xf]
  %v575 = vld [vmem:[%s1 + $0x2c] sm:$0xf]
  %v576 = vld [vmem:[%s1 + $0x30] sm:$0xf]
  %v577 = vld [vmem:[%s1 + $0x34] sm:$0xf]
  %v578 = vld [vmem:[%s1 + $0x38] sm:$0xf]
  %v579 = vld [vmem:[%s1 + $0x3c] sm:$0xf]
  %v580 = vld [vmem:[%s1 + $0x40] sm:$0xf]
  %v581 = vld [vmem:[%s1 + $0x44] sm:$0xf]
  %v598 = vunpack.c.l.b16 %v565
  %v599 = vunpack.c.l.b16 %v566
  %v600 = vunpack.c.l.b16 %v567
  %v601 = vunpack.c.l.b16 %v568
  %v602 = vunpack.c.l.b16 %v569
  %v603 = vunpack.c.l.b16 %v570
  %v604 = vunpack.c.l.b16 %v571
  %v605 = vunpack.c.l.b16 %v572
  %v606 = vunpack.c.l.b16 %v573
  %v607 = vunpack.c.l.b16 %v574
  %v608 = vunpack.c.l.b16 %v575
  %v609 = vunpack.c.l.b16 %v576
  %v610 = vunpack.c.l.b16 %v577
  %v611 = vunpack.c.l.b16 %v578
  %v612 = vunpack.c.l.b16 %v579
  %v613 = vunpack.c.l.b16 %v580
  %v614 = vpack.c.b16 %v599, %v598
  %v615 = vpack.c.b16 %v601, %v600
  %v616 = vpack.c.b16 %v603, %v602
  %v617 = vpack.c.b16 %v605, %v604
  %v618 = vpack.c.b16 %v607, %v606
  %v619 = vpack.c.b16 %v609, %v608
  %v620 = vpack.c.b16 %v611, %v610
  %v621 = vpack.c.b16 %v613, %v612
  %v623 = vsel %vm156, %v614, 0
  %v626 = vsel %vm156, %v615, 0
  %v629 = vsel %vm156, %v616, 0
  %v632 = vsel %vm156, %v617, 0
  %v635 = vsel %vm156, %v618, 0
  %v638 = vsel %vm156, %v619, 0
  %v641 = vsel %vm156, %v620, 0
  %v644 = vsel %vm156, %v621, 0
  %646 = vmatpush.bf16.msra.mxu0 0
  %647 = vmatpush.bf16.msra.mxu0 0
  %648 = vmatpush.bf16.msra.mxu0 0
  %649 = vmatpush.bf16.msra.mxu0 %v183
  %650 = vmatpush.bf16.msra.mxu0 %v150
  %651 = vmatpush.bf16.msra.mxu0 %v149
  %652 = vmatpush.bf16.msra.mxu0 %v148
  %653 = vmatpush.bf16.msra.mxu0 %v147
  %654 = vmatmul.bf16.gmra.mxu0 %v623
  %v655 = vpop.f32.mrf.mxu0
  %v656 = vadd.f32 0.0, %v655
  %v657 = vpop.f32.mrf.mxu0
  %v658 = vadd.f32 0.0, %v657
  %659 = vmatmul.bf16.gmra.mxu0 %v626
  %v660 = vpop.f32.mrf.mxu0
  %v661 = vadd.f32 0.0, %v660
  %v662 = vpop.f32.mrf.mxu0
  %v663 = vadd.f32 0.0, %v662
  %664 = vmatmul.bf16.gmra.mxu0 %v629
  %v665 = vpop.f32.mrf.mxu0
  %v666 = vadd.f32 0.0, %v665
  %v667 = vpop.f32.mrf.mxu0
  %v668 = vadd.f32 0.0, %v667
  %669 = vmatmul.bf16.gmra.mxu0 %v632
  %v670 = vpop.f32.mrf.mxu0
  %v671 = vadd.f32 0.0, %v670
  %v672 = vpop.f32.mrf.mxu0
  %v673 = vadd.f32 0.0, %v672
  %674 = vmatmul.bf16.gmra.mxu0 %v635
  %v675 = vpop.f32.mrf.mxu0
  %v676 = vadd.f32 0.0, %v675
  %v677 = vpop.f32.mrf.mxu0
  %v678 = vadd.f32 0.0, %v677
  %679 = vmatmul.bf16.gmra.mxu0 %v638
  %v680 = vpop.f32.mrf.mxu0
  %v681 = vadd.f32 0.0, %v680
  %v682 = vpop.f32.mrf.mxu0
  %v683 = vadd.f32 0.0, %v682
  %684 = vmatmul.bf16.gmra.mxu0 %v641
  %v685 = vpop.f32.mrf.mxu0
  %v686 = vadd.f32 0.0, %v685
  %v687 = vpop.f32.mrf.mxu0
  %v688 = vadd.f32 0.0, %v687
  %689 = vmatmul.bf16.gmra.mxu0 %v644
  %v690 = vpop.f32.mrf.mxu0
  %v691 = vadd.f32 0.0, %v690
  %v692 = vpop.f32.mrf.mxu0
  %v693 = vadd.f32 0.0, %v692
  %694 = vdwg.mxu0
  %v696 = vunpack.c.l.b16 %v581
  %v697 = vpack.c.b16 %v600, %v599
  %v698 = vpack.c.b16 %v602, %v601
  %v699 = vpack.c.b16 %v604, %v603
  %v700 = vpack.c.b16 %v606, %v605
  %v701 = vpack.c.b16 %v608, %v607
  %v702 = vpack.c.b16 %v610, %v609
  %v703 = vpack.c.b16 %v612, %v611
  %v704 = vpack.c.b16 %v696, %v613
  %v706 = vsel %vm156, %v697, 0
  %v709 = vsel %vm156, %v698, 0
  %v712 = vsel %vm156, %v699, 0
  %v715 = vsel %vm156, %v700, 0
  %v718 = vsel %vm156, %v701, 0
  %v721 = vsel %vm156, %v702, 0
  %v724 = vsel %vm156, %v703, 0
  %v727 = vsel %vm156, %v704, 0
  %729 = vmatpush.bf16.msra.mxu0 0
  %730 = vmatpush.bf16.msra.mxu0 0
  %731 = vmatpush.bf16.msra.mxu0 0
  %732 = vmatpush.bf16.msra.mxu0 %v296
  %733 = vmatpush.bf16.msra.mxu0 %v265
  %734 = vmatpush.bf16.msra.mxu0 %v264
  %735 = vmatpush.bf16.msra.mxu0 %v263
  %736 = vmatpush.bf16.msra.mxu0 %v262
  %737 = vmatmul.bf16.gmra.mxu0 %v706
  %v738 = vpop.f32.mrf.mxu0
  %v739 = vadd.f32 0.0, %v738
  %v740 = vpop.f32.mrf.mxu0
  %v741 = vadd.f32 0.0, %v740
  %742 = vmatmul.bf16.gmra.mxu0 %v709
  %v743 = vpop.f32.mrf.mxu0
  %v744 = vadd.f32 0.0, %v743
  %v745 = vpop.f32.mrf.mxu0
  %v746 = vadd.f32 0.0, %v745
  %747 = vmatmul.bf16.gmra.mxu0 %v712
  %v748 = vpop.f32.mrf.mxu0
  %v749 = vadd.f32 0.0, %v748
  %v750 = vpop.f32.mrf.mxu0
  %v751 = vadd.f32 0.0, %v750
  %752 = vmatmul.bf16.gmra.mxu0 %v715
  %v753 = vpop.f32.mrf.mxu0
  %v754 = vadd.f32 0.0, %v753
  %v755 = vpop.f32.mrf.mxu0
  %v756 = vadd.f32 0.0, %v755
  %757 = vmatmul.bf16.gmra.mxu0 %v718
  %v758 = vpop.f32.mrf.mxu0
  %v759 = vadd.f32 0.0, %v758
  %v760 = vpop.f32.mrf.mxu0
  %v761 = vadd.f32 0.0, %v760
  %762 = vmatmul.bf16.gmra.mxu0 %v721
  %v763 = vpop.f32.mrf.mxu0
  %v764 = vadd.f32 0.0, %v763
  %v765 = vpop.f32.mrf.mxu0
  %v766 = vadd.f32 0.0, %v765
  %767 = vmatmul.bf16.gmra.mxu0 %v724
  %v768 = vpop.f32.mrf.mxu0
  %v769 = vadd.f32 0.0, %v768
  %v770 = vpop.f32.mrf.mxu0
  %v771 = vadd.f32 0.0, %v770
  %772 = vmatmul.bf16.gmra.mxu0 %v727
  %v773 = vpop.f32.mrf.mxu0
  %v774 = vadd.f32 0.0, %v773
  %v775 = vpop.f32.mrf.mxu0
  %v776 = vadd.f32 0.0, %v775
  %777 = vdwg.mxu0
  %v779 = vunpack.c.l.b16 %v564
  %v780 = vpack.c.b16 %v598, %v779
  %v782 = vsel %vm156, %v780, 0
  %784 = vmatpush.bf16.msra.mxu0 0
  %785 = vmatpush.bf16.msra.mxu0 0
  %786 = vmatpush.bf16.msra.mxu0 0
  %787 = vmatpush.bf16.msra.mxu0 %v381
  %788 = vmatpush.bf16.msra.mxu0 %v371
  %789 = vmatpush.bf16.msra.mxu0 %v370
  %790 = vmatpush.bf16.msra.mxu0 %v369
  %791 = vmatpush.bf16.msra.mxu0 %v368
  %792 = vmatmul.bf16.gmra.mxu0 %v782
  %v793 = vpop.f32.mrf.mxu0
  %v794 = vadd.f32 %v656, %v793
  %v795 = vpop.f32.mrf.mxu0
  %v796 = vadd.f32 %v658, %v795
  %797 = vmatmul.bf16.gmra.mxu0 %v706
  %v798 = vpop.f32.mrf.mxu0
  %v799 = vadd.f32 %v661, %v798
  %v800 = vpop.f32.mrf.mxu0
  %v801 = vadd.f32 %v663, %v800
  %802 = vmatmul.bf16.gmra.mxu0 %v709
  %v803 = vpop.f32.mrf.mxu0
  %v804 = vadd.f32 %v666, %v803
  %v805 = vpop.f32.mrf.mxu0
  %v806 = vadd.f32 %v668, %v805
  %807 = vmatmul.bf16.gmra.mxu0 %v712
  %v808 = vpop.f32.mrf.mxu0
  %v809 = vadd.f32 %v671, %v808
  %v810 = vpop.f32.mrf.mxu0
  %v811 = vadd.f32 %v673, %v810
  %812 = vmatmul.bf16.gmra.mxu0 %v715
  %v813 = vpop.f32.mrf.mxu0
  %v814 = vadd.f32 %v676, %v813
  %v815 = vpop.f32.mrf.mxu0
  %v816 = vadd.f32 %v678, %v815
  %817 = vmatmul.bf16.gmra.mxu0 %v718
  %v818 = vpop.f32.mrf.mxu0
  %v819 = vadd.f32 %v681, %v818
  %v820 = vpop.f32.mrf.mxu0
  %v821 = vadd.f32 %v683, %v820
  %822 = vmatmul.bf16.gmra.mxu0 %v721
  %v823 = vpop.f32.mrf.mxu0
  %v824 = vadd.f32 %v686, %v823
  %v825 = vpop.f32.mrf.mxu0
  %v826 = vadd.f32 %v688, %v825
  %827 = vmatmul.bf16.gmra.mxu0 %v724
  %v828 = vpop.f32.mrf.mxu0
  %v829 = vadd.f32 %v691, %v828
  %v830 = vpop.f32.mrf.mxu0
  %v831 = vadd.f32 %v693, %v830
  %832 = vdwg.mxu0
  %v833 = vadd.f32 %v794, %v739
  %v834 = vadd.f32 %v796, %v741
  %v835 = vadd.f32 %v799, %v744
  %v836 = vadd.f32 %v801, %v746
  %v837 = vadd.f32 %v804, %v749
  %v838 = vadd.f32 %v806, %v751
  %v839 = vadd.f32 %v809, %v754
  %v840 = vadd.f32 %v811, %v756
  %v841 = vadd.f32 %v814, %v759
  %v842 = vadd.f32 %v816, %v761
  %v843 = vadd.f32 %v819, %v764
  %v844 = vadd.f32 %v821, %v766
  %v845 = vadd.f32 %v824, %v769
  %v846 = vadd.f32 %v826, %v771
  %v847 = vadd.f32 %v829, %v774
  %v848 = vadd.f32 %v831, %v776
  %v849 = vadd.f32 %v833, %v449
  %v850 = vadd.f32 %v834, %v449
  %v851 = vadd.f32 %v835, %v449
  %v852 = vadd.f32 %v836, %v449
  %v853 = vadd.f32 %v837, %v449
  %v854 = vadd.f32 %v838, %v449
  %v855 = vadd.f32 %v839, %v449
  %v856 = vadd.f32 %v840, %v449
  %v857 = vadd.f32 %v841, %v449
  %v858 = vadd.f32 %v842, %v449
  %v859 = vadd.f32 %v843, %v449
  %v860 = vadd.f32 %v844, %v449
  %v861 = vadd.f32 %v845, %v449
  %v862 = vadd.f32 %v846, %v449
  %v863 = vadd.f32 %v847, %v449
  %v864 = vadd.f32 %v848, %v449
  %v865 = vmax.f32 %v849, 0.0
  %v866 = vmax.f32 %v850, 0.0
  %v867 = vmax.f32 %v851, 0.0
  %v868 = vmax.f32 %v852, 0.0
  %v869 = vmax.f32 %v853, 0.0
  %v870 = vmax.f32 %v854, 0.0
  %v871 = vmax.f32 %v855, 0.0
  %v872 = vmax.f32 %v856, 0.0
  %v873 = vmax.f32 %v857, 0.0
  %v874 = vmax.f32 %v858, 0.0
  %v875 = vmax.f32 %v859, 0.0
  %v876 = vmax.f32 %v860, 0.0
  %v877 = vmax.f32 %v861, 0.0
  %v878 = vmax.f32 %v862, 0.0
  %v879 = vmax.f32 %v863, 0.0
  %v880 = vmax.f32 %v864, 0.0
  %v881 = vadd.f32 %v865, %v866
  %v882 = vadd.f32 %v881, %v867
  %v883 = vadd.f32 %v882, %v868
  %v884 = vadd.f32 %v883, %v869
  %v885 = vadd.f32 %v884, %v870
  %v886 = vadd.f32 %v885, %v871
  %v887 = vadd.f32 %v886, %v872
  %v888 = vadd.f32 %v887, %v873
  %v889 = vadd.f32 %v888, %v874
  %v890 = vadd.f32 %v889, %v875
  %v891 = vadd.f32 %v890, %v876
  %v892 = vadd.f32 %v891, %v877
  %v893 = vadd.f32 %v892, %v878
  %v894 = vadd.f32 %v893, %v879
  %v895 = vadd.f32 %v894, %v880
  %v896 = vpack.c.bf16 %v895, %v895
  %897 = vmatpush.bf16.msra.mxu0 %v541
  %898 = vmatpush.bf16.msra.mxu0 %v540
  %899 = vmatpush.bf16.msra.mxu0 %v539
  %900 = vmatpush.bf16.msra.mxu0 %v538
  %901 = vmatpush.bf16.msra.mxu0 %v537
  %902 = vmatpush.bf16.msra.mxu0 %v536
  %903 = vmatpush.bf16.msra.mxu0 %v535
  %904 = vmatpush.bf16.msra.mxu0 %v534
  %905 = vmatmul.bf16.gmra.mxu0 %v896
  %v906 = vpop.f32.mrf.mxu0
  %v907 = vadd.f32 %v500, %v906
  %v908 = vpop.f32.mrf.mxu0
  %909 = vdwg.mxu0
  %910 = vst [vmem:[%s7] sm:$0xff] %v907
  // Predicated region
  $region26: #{siamese_trainer_forward.1} parent=0 // pred_check
    _
  $region27: #{siamese_trainer_forward.1} parent=0 // pred_check_branch
    %912 = sbr.rel (0) target = $region29
  $region28: #{siamese_trainer_forward.1} parent=0 // pred_region
    _
  $region29: #{siamese_trainer_forward.1} parent=0 // pred_fallthru
    _
  // Predicated region
  $region30: #{siamese_trainer_forward.1} parent=0 // pred_check
    _
  $region31: #{siamese_trainer_forward.1} parent=0 // pred_check_branch
    %914 = sbr.rel (0) target = $region33
  $region32: #{siamese_trainer_forward.1} parent=0 // pred_region
    _
  $region33: #{siamese_trainer_forward.1} parent=0 // pred_fallthru
    _
  // Predicated region
  $region34: #{siamese_trainer_forward.1} parent=0 // pred_check
    _
  $region35: #{siamese_trainer_forward.1} parent=0 // pred_check_branch
    %916 = sbr.rel (0) target = $region37
  $region36: #{siamese_trainer_forward.1} parent=0 // pred_region
    _
  $region37: #{siamese_trainer_forward.1} parent=0 // pred_fallthru
    _
  // Predicated region
  $region38: #{siamese_trainer_forward.1} parent=0 // pred_check
    _
  $region39: #{siamese_trainer_forward.1} parent=0 // pred_check_branch
    %918 = sbr.rel (0) target = $region41
  $region40: #{siamese_trainer_forward.1} parent=0 // pred_region
    _
  $region41: #{siamese_trainer_forward.1} parent=0 // pred_fallthru
    _

</llo_original>
